<compile_context>
chip_gen: v7x
topology: tpu7x:2x2x1
jax: 0.10.0
libtpu: 0.0.40
codegen_flags: <defaults>
</compile_context>

<pallas_src>
import functools

import jax
import jax.numpy as jnp
from jax.experimental import pallas as pl
from jax.experimental.pallas import tpu as pltpu

LN_EPS = 1e-5  # nn.LayerNorm default


def _round_up(x, m):
    return ((x + m - 1) // m) * m


def _vmem_budget_bytes():
    """Per-core VMEM limit with headroom (v7x: 64 MiB phys; v5e/v6e: 128 MiB)."""
    try:
        cap = int(pltpu.get_tpu_info().vmem_capacity_bytes)
    except Exception:
        cap = 64 * 1024 * 1024  # conservative (v7x) fallback
    return max(32 * 1024 * 1024, min(cap - 16 * 1024 * 1024, 100 * 1024 * 1024))


def _layer_norm_f32(x, g, b):
    mean = jnp.mean(x, axis=-1, keepdims=True)
    xc = x - mean
    var = jnp.mean(xc * xc, axis=-1, keepdims=True)
    return xc * jax.lax.rsqrt(var + LN_EPS) * g + b


def _ffn_fused_kernel(with_ln, x_ref, g_ref, b_ref, w1_ref, b1_ref, w2_ref,
                      b2_ref, o_ref):
    """Weights-resident path: grid=(row tiles,), full weight blocks in VMEM."""
    x = x_ref[...].astype(jnp.float32)
    if with_ln:
        x = _layer_norm_f32(x, g_ref[...], b_ref[...])
    h = jnp.dot(x.astype(jnp.bfloat16), w1_ref[...],
                preferred_element_type=jnp.float32) + b1_ref[...]
    h = jnp.maximum(h, 0.0)  # Dropout is inference-mode identity.
    # TODO(synk): training-mode dropout mask (would need pltpu.prng_* here).
    o_ref[...] = (jnp.dot(h.astype(jnp.bfloat16), w2_ref[...],
                          preferred_element_type=jnp.float32)
                  + b2_ref[...]).astype(o_ref.dtype)


def _ffn_tiled_kernel(with_ln, x_ref, g_ref, b_ref, w1_ref, b1_ref, w2_ref,
                      b2_ref, o_ref, xln_ref):
    """Hidden-tiled path: grid=(row tiles, hidden tiles).

    The hidden axis is the fc2 reduction; partial products accumulate directly
    into the f32 output block (constant block index across f -> VMEM-resident).
    LayerNorm(x) is cached once per row tile in a bf16 scratch.
    """
    f = pl.program_id(1)

    @pl.when(f == 0)
    def _init():
        x = x_ref[...].astype(jnp.float32)
        if with_ln:
            x = _layer_norm_f32(x, g_ref[...], b_ref[...])
        xln_ref[...] = x.astype(jnp.bfloat16)          # bf16 cache for all f
        o_ref[...] = jnp.zeros_like(o_ref)

    # fc1 tile: (TM, D) @ (D, TF) on the MXU (bf16 in, f32 acc); bias + ReLU f32.
    h = jnp.dot(xln_ref[...], w1_ref[...],
                preferred_element_type=jnp.float32) + b1_ref[...]
    h = jnp.maximum(h, 0.0)  # Dropout is inference-mode identity.

    # fc2 partial: (TM, TF) @ (TF, D), accumulated in the resident output block.
    o_ref[...] += jnp.dot(h.astype(jnp.bfloat16), w2_ref[...],
                          preferred_element_type=jnp.float32)

    @pl.when(f == pl.num_programs(1) - 1)
    def _finalize():
        o_ref[...] += b2_ref[...]


def feed_forward(x, params, *, with_ff=True, max_row_tile=512,
                 max_hidden_tile=1024, force_tiled=False):
    """x: (..., D).  params: g, b (LayerNorm), w1 (D,H), b1 (1,H), w2 (H,D),
    b2 (1,D).  Weights are cast to bf16 for the MXU; output is f32."""
    orig_shape = x.shape
    D = orig_shape[-1]
    H = params["w1"].shape[1]

    # Flatten leading dims (fill MXU M); keep native dtype (no wrapper upcast).
    x2 = x.reshape(-1, D)
    x_bytes = jnp.dtype(x2.dtype).itemsize
    N = x2.shape[0]

    vmem_limit = _vmem_budget_bytes()
    budget = int(0.9 * vmem_limit)

    # Row tile: big TM sets arithmetic intensity on the weight stream; for
    # small N split rows into 2 tiles so both TensorCores get work (v7x).
    if N >= 2 * max_row_tile:
        TM = max_row_tile
    else:
        TM = max(8, _round_up(-(-N // 2), 8))

    g = params["g"].reshape(1, D).astype(jnp.float32)
    b = params["b"].reshape(1, D).astype(jnp.float32)
    b2 = params["b2"].reshape(1, D).astype(jnp.float32)
    w1 = params["w1"].astype(jnp.bfloat16)
    w2 = params["w2"].astype(jnp.bfloat16)
    b1 = params["b1"].reshape(1, H).astype(jnp.float32)

    small = 2 * 3 * D * 4  # g, b, b2 (double-buffered, tiny)

    def fast_bytes(tm, h_pad):
        wbytes = 2 * (D * h_pad * 2 + h_pad * D * 2 + h_pad * 4)  # w1,w2,b1 x2 buf
        return wbytes + 2 * tm * D * x_bytes + 2 * tm * D * 4 + small

    def tiled_bytes(tm, tf):
        wbytes = 2 * (D * tf * 2 + tf * D * 2 + tf * 4)
        return (wbytes + 2 * tm * D * x_bytes + 2 * tm * D * 4
                + tm * D * 2 + small)  # + bf16 LN cache scratch

    # 256-aligned hidden for the v6e/v7x 256x256 MXU (128 is enough on v5e).
    H_pad_fast = _round_up(H, 256) if H > 128 else _round_up(H, 128)

    tm_floor = min(TM, 128)
    use_fast = (not force_tiled) and fast_bytes(tm_floor, H_pad_fast) <= budget

    kernel_ln = bool(with_ff)

    if use_fast:
        while fast_bytes(TM, H_pad_fast) > budget:
            TM = max(tm_floor, TM // 2)
        H_pad = H_pad_fast
        if H_pad != H:
            # Zero-padded hidden cols/rows give ReLU(0 + 0) = 0 -> no effect.
            w1 = jnp.pad(w1, ((0, 0), (0, H_pad - H)))
            b1 = jnp.pad(b1, ((0, 0), (0, H_pad - H)))
            w2 = jnp.pad(w2, ((0, H_pad - H), (0, 0)))

        N_pad = _round_up(N, TM)
        if N_pad != N:
            x2 = jnp.pad(x2, ((0, N_pad - N), (0, 0)))

        grid = (N_pad // TM,)
        in_specs = [
            pl.BlockSpec((TM, D), lambda i: (i, 0)),     # x row tile
            pl.BlockSpec((1, D), lambda i: (0, 0)),      # LN gamma
            pl.BlockSpec((1, D), lambda i: (0, 0)),      # LN beta
            pl.BlockSpec((D, H_pad), lambda i: (0, 0)),  # w1 (resident)
            pl.BlockSpec((1, H_pad), lambda i: (0, 0)),  # b1 (resident)
            pl.BlockSpec((H_pad, D), lambda i: (0, 0)),  # w2 (resident)
            pl.BlockSpec((1, D), lambda i: (0, 0)),      # b2
        ]
        out_spec = pl.BlockSpec((TM, D), lambda i: (i, 0))
        kernel = functools.partial(_ffn_fused_kernel, kernel_ln)
        scratch_shapes = []
        dims = ("parallel",)
    else:
        # Hidden (fc2 reduction) axis tiled; shrink TF then TM until it fits.
        TF = min(_round_up(H, 256), max(128, _round_up(max_hidden_tile, 128)))
        while TF > 128 and tiled_bytes(TM, TF) > budget:
            TF = max(128, _round_up(TF // 2, 128))
        while TM > 8 and tiled_bytes(TM, TF) > budget:
            TM = max(8, _round_up(TM // 2, 8))

        H_pad = _round_up(H, TF)
        if H_pad != H:
            w1 = jnp.pad(w1, ((0, 0), (0, H_pad - H)))
            b1 = jnp.pad(b1, ((0, 0), (0, H_pad - H)))
            w2 = jnp.pad(w2, ((0, H_pad - H), (0, 0)))

        N_pad = _round_up(N, TM)
        if N_pad != N:
            x2 = jnp.pad(x2, ((0, N_pad - N), (0, 0)))

        grid = (N_pad // TM, H_pad // TF)
        in_specs = [
            pl.BlockSpec((TM, D), lambda i, f: (i, 0)),   # x (same block over f)
            pl.BlockSpec((1, D), lambda i, f: (0, 0)),    # LN gamma
            pl.BlockSpec((1, D), lambda i, f: (0, 0)),    # LN beta
            pl.BlockSpec((D, TF), lambda i, f: (0, f)),   # w1 hidden tile
            pl.BlockSpec((1, TF), lambda i, f: (0, f)),   # b1 hidden tile
            pl.BlockSpec((TF, D), lambda i, f: (f, 0)),   # w2 hidden tile
            pl.BlockSpec((1, D), lambda i, f: (0, 0)),    # b2
        ]
        out_spec = pl.BlockSpec((TM, D), lambda i, f: (i, 0))
        kernel = functools.partial(_ffn_tiled_kernel, kernel_ln)
        scratch_shapes = [pltpu.VMEM((TM, D), jnp.bfloat16)]  # LN cache (bf16)
        dims = ("parallel", "arbitrary")

    out = pl.pallas_call(
        kernel,
        out_shape=jax.ShapeDtypeStruct((N_pad, D), jnp.float32),
        grid_spec=pltpu.PrefetchScalarGridSpec(
            num_scalar_prefetch=0,
            grid=grid,
            in_specs=in_specs,
            out_specs=out_spec,
            scratch_shapes=scratch_shapes,
        ),
        compiler_params=pltpu.CompilerParams(
            dimension_semantics=dims,
            vmem_limit_bytes=vmem_limit),
    )(x2, g, b, w1, b1, w2, b2)

    return out[:N].reshape(orig_shape[:-1] + (D,))


# ---------------------------------------------------------------------------
# pure-JAX references (f32 and bf16-matmul-matched) for sanity checks
# ---------------------------------------------------------------------------
def reference_ffn(x, params, *, with_ff=True, bf16_matmul=False):
    h = x.astype(jnp.float32)
    if with_ff:
        m = jnp.mean(h, -1, keepdims=True)
        v = jnp.mean((h - m) ** 2, -1, keepdims=True)
        h = (h - m) * jax.lax.rsqrt(v + LN_EPS) * params["g"] + params["b"]
    if bf16_matmul:
        a = jnp.dot(h.astype(jnp.bfloat16), params["w1"].astype(jnp.bfloat16),
                    preferred_element_type=jnp.float32) + params["b1"]
        a = jnp.maximum(a, 0.0)
        out = jnp.dot(a.astype(jnp.bfloat16), params["w2"].astype(jnp.bfloat16),
                      preferred_element_type=jnp.float32) + params["b2"]
    else:
        a = jnp.maximum(h @ params["w1"] + params["b1"], 0.0)
        out = a @ params["w2"] + params["b2"]
    return out


def init_params(key, dim_in, hidden):
    k1, k2, k3, k4 = jax.random.split(key, 4)
    std1 = (2.0 / hidden) ** 0.5          # kaiming_normal_, fan_out, relu
    return {
        "g": jnp.ones((1, dim_in), jnp.float32),     # LayerNorm weight
        "b": jnp.zeros((1, dim_in), jnp.float32),    # LayerNorm bias
        "w1": std1 * jax.random.normal(k1, (dim_in, hidden), jnp.float32),
        "b1": 0.05 * jax.random.normal(k2, (1, hidden), jnp.float32),
        # zeroLL=True would zero fc2 at init; forward semantics are identical,
        # so use nonzero weights here to make the numerical check meaningful.
        "w2": 0.05 * jax.random.normal(k3, (hidden, dim_in), jnp.float32),
        "b2": 0.05 * jax.random.normal(k4, (1, dim_in), jnp.float32),
    }


if __name__ == "__main__":
    # small config consistent with the module: batch=2, seq=8, dimIn=32, alpha=8
    B, S, DIM_IN, ALPHA = 2, 8, 32, 8
    HID = DIM_IN * ALPHA                   # 256

    key = jax.random.PRNGKey(0)
    kx, kp = jax.random.split(key)
    x = jax.random.normal(kx, (B, S, DIM_IN), jnp.float32)
    params = init_params(kp, DIM_IN, HID)

    # 1) weights-resident fast path (default for this size)
    out = jax.block_until_ready(feed_forward(x, params, with_ff=True))
    assert out.shape == (B, S, DIM_IN)

    ref_bf16 = reference_ffn(x, params, with_ff=True, bf16_matmul=True)
    err = jnp.max(jnp.abs(out - ref_bf16))
    assert jnp.allclose(out, ref_bf16, atol=2e-3, rtol=2e-3), f"bf16-ref max err {err}"

    ref_f32 = reference_ffn(x, params, with_ff=True, bf16_matmul=False)
    err32 = jnp.max(jnp.abs(out - ref_f32))
    assert jnp.allclose(out, ref_f32, atol=5e-2, rtol=5e-2), f"f32-ref max err {err32}"

    # 2) withFF=False path (LayerNorm skipped), per the module flag
    out_noln = jax.block_until_ready(feed_forward(x, params, with_ff=False))
    ref_noln = reference_ffn(x, params, with_ff=False, bf16_matmul=True)
    assert jnp.allclose(out_noln, ref_noln, atol=2e-3, rtol=2e-3)

    # 3) hidden-tiled fallback path (forced; 2 hidden tiles of 128)
    out_tiled = jax.block_until_ready(
        feed_forward(x, params, with_ff=True, force_tiled=True, max_hidden_tile=128))
    err_t = jnp.max(jnp.abs(out_tiled - ref_bf16))
    assert jnp.allclose(out_tiled, ref_bf16, atol=2e-3, rtol=2e-3), f"tiled max err {err_t}"

    print("KERNEL_OK")
</pallas_src>

<mosaic_0001>
module attributes {stable_mosaic.version = 11 : i64} {
  func.func @_ffn_fused_kernel(%arg0: i32, %arg1: memref<8x32xf32, #tpu.memory_space<vmem>>, %arg2: memref<1x32xf32, #tpu.memory_space<vmem>>, %arg3: memref<1x32xf32, #tpu.memory_space<vmem>>, %arg4: memref<32x256xbf16, #tpu.memory_space<vmem>>, %arg5: memref<1x256xf32, #tpu.memory_space<vmem>>, %arg6: memref<256x32xbf16, #tpu.memory_space<vmem>>, %arg7: memref<1x32xf32, #tpu.memory_space<vmem>>, %arg8: memref<8x32xf32, #tpu.memory_space<vmem>>) attributes {dimension_semantics = [#tpu.dimension_semantics<parallel>], iteration_bounds = array<i64: 2>, scalar_prefetch = 0 : i64, scratch_operands = 0 : i64, tpu.core_type = #tpu.core_type<tc>, window_params = [{transform_indices = @transform_0, window_bounds = array<i64: 8, 32>}, {pipeline_mode = #tpu.pipeline_mode<synchronous>, transform_indices = @transform_1, window_bounds = array<i64: 1, 32>}, {pipeline_mode = #tpu.pipeline_mode<synchronous>, transform_indices = @transform_2, window_bounds = array<i64: 1, 32>}, {pipeline_mode = #tpu.pipeline_mode<synchronous>, transform_indices = @transform_3, window_bounds = array<i64: 32, 256>}, {pipeline_mode = #tpu.pipeline_mode<synchronous>, transform_indices = @transform_4, window_bounds = array<i64: 1, 256>}, {pipeline_mode = #tpu.pipeline_mode<synchronous>, transform_indices = @transform_5, window_bounds = array<i64: 256, 32>}, {pipeline_mode = #tpu.pipeline_mode<synchronous>, transform_indices = @transform_6, window_bounds = array<i64: 1, 32>}, {transform_indices = @transform_7, window_bounds = array<i64: 8, 32>}]} {
    %c0 = arith.constant 0 : index
    %c0_0 = arith.constant 0 : index
    %0 = vector.load %arg1[%c0, %c0_0] : memref<8x32xf32, #tpu.memory_space<vmem>>, vector<8x32xf32>
    %c0_1 = arith.constant 0 : index
    %c0_2 = arith.constant 0 : index
    %1 = vector.load %arg2[%c0_1, %c0_2] : memref<1x32xf32, #tpu.memory_space<vmem>>, vector<1x32xf32>
    %c0_3 = arith.constant 0 : index
    %c0_4 = arith.constant 0 : index
    %2 = vector.load %arg3[%c0_3, %c0_4] : memref<1x32xf32, #tpu.memory_space<vmem>>, vector<1x32xf32>
    %cst = arith.constant dense<0.000000e+00> : vector<8xf32>
    %3 = vector.multi_reduction <add>, %0, %cst [1] : vector<8x32xf32> to vector<8xf32>
    %4 = vector.shape_cast %3 : vector<8xf32> to vector<8x1xf32>
    %cst_5 = arith.constant 3.200000e+01 : f32
    %5 = vector.broadcast %cst_5 : f32 to vector<8x1xf32>
    %6 = arith.divf %4, %5 : vector<8x1xf32>
    %7 = vector.broadcast %6 : vector<8x1xf32> to vector<8x32xf32>
    %8 = arith.subf %0, %7 : vector<8x32xf32>
    %9 = arith.mulf %8, %8 : vector<8x32xf32>
    %cst_6 = arith.constant dense<0.000000e+00> : vector<8xf32>
    %10 = vector.multi_reduction <add>, %9, %cst_6 [1] : vector<8x32xf32> to vector<8xf32>
    %11 = vector.shape_cast %10 : vector<8xf32> to vector<8x1xf32>
    %cst_7 = arith.constant 3.200000e+01 : f32
    %12 = vector.broadcast %cst_7 : f32 to vector<8x1xf32>
    %13 = arith.divf %11, %12 : vector<8x1xf32>
    %cst_8 = arith.constant 9.99999974E-6 : f32
    %14 = vector.broadcast %cst_8 : f32 to vector<8x1xf32>
    %15 = arith.addf %13, %14 : vector<8x1xf32>
    %16 = math.rsqrt %15 : vector<8x1xf32>
    %17 = vector.broadcast %16 : vector<8x1xf32> to vector<8x32xf32>
    %18 = arith.mulf %8, %17 : vector<8x32xf32>
    %19 = vector.broadcast %1 : vector<1x32xf32> to vector<8x32xf32>
    %20 = arith.mulf %18, %19 : vector<8x32xf32>
    %21 = vector.broadcast %2 : vector<1x32xf32> to vector<8x32xf32>
    %22 = arith.addf %20, %21 : vector<8x32xf32>
    %23 = arith.truncf %22 : vector<8x32xf32> to vector<8x32xbf16>
    %c0_9 = arith.constant 0 : index
    %c0_10 = arith.constant 0 : index
    %24 = vector.load %arg4[%c0_9, %c0_10] : memref<32x256xbf16, #tpu.memory_space<vmem>>, vector<32x256xbf16>
    %cst_11 = arith.constant dense<0.000000e+00> : vector<8x256xf32>
    %25 = tpu.matmul %23, %24, %cst_11 {dimension_numbers = #tpu.dot_dimension_numbers<[1], [0], [0], [1], [0, 0, 1, 1], [], []>} : vector<8x32xbf16>, vector<32x256xbf16>, vector<8x256xf32> -> vector<8x256xf32>
    %c0_12 = arith.constant 0 : index
    %c0_13 = arith.constant 0 : index
    %26 = vector.load %arg5[%c0_12, %c0_13] : memref<1x256xf32, #tpu.memory_space<vmem>>, vector<1x256xf32>
    %27 = vector.broadcast %26 : vector<1x256xf32> to vector<8x256xf32>
    %28 = arith.addf %25, %27 : vector<8x256xf32>
    %cst_14 = arith.constant 0.000000e+00 : f32
    %29 = vector.broadcast %cst_14 : f32 to vector<8x256xf32>
    %30 = arith.maximumf %28, %29 : vector<8x256xf32>
    %31 = arith.truncf %30 : vector<8x256xf32> to vector<8x256xbf16>
    %c0_15 = arith.constant 0 : index
    %c0_16 = arith.constant 0 : index
    %32 = vector.load %arg6[%c0_15, %c0_16] : memref<256x32xbf16, #tpu.memory_space<vmem>>, vector<256x32xbf16>
    %cst_17 = arith.constant dense<0.000000e+00> : vector<8x32xf32>
    %33 = tpu.matmul %31, %32, %cst_17 {dimension_numbers = #tpu.dot_dimension_numbers<[1], [0], [0], [1], [0, 0, 1, 1], [], []>} : vector<8x256xbf16>, vector<256x32xbf16>, vector<8x32xf32> -> vector<8x32xf32>
    %c0_18 = arith.constant 0 : index
    %c0_19 = arith.constant 0 : index
    %34 = vector.load %arg7[%c0_18, %c0_19] : memref<1x32xf32, #tpu.memory_space<vmem>>, vector<1x32xf32>
    %35 = vector.broadcast %34 : vector<1x32xf32> to vector<8x32xf32>
    %36 = arith.addf %33, %35 : vector<8x32xf32>
    %c0_20 = arith.constant 0 : index
    %c0_21 = arith.constant 0 : index
    %37 = vector.load %arg8[%c0_20, %c0_21] : memref<8x32xf32, #tpu.memory_space<vmem>>, vector<8x32xf32>
    tpu.vector_store %arg8[%c0_20, %c0_21], %36 {strides = array<i32>} : memref<8x32xf32, #tpu.memory_space<vmem>>, vector<8x32xf32>,
    return
  }
  func.func @transform_0(%arg0: i32) -> (i32, i32) {
    %c0_i32 = arith.constant 0 : i32
    %c0_i32_0 = arith.constant 0 : i32
    return %arg0, %c0_i32 : i32, i32
  }
  func.func @transform_1(%arg0: i32) -> (i32, i32) {
    %c0_i32 = arith.constant 0 : i32
    %c0_i32_0 = arith.constant 0 : i32
    %c0_i32_1 = arith.constant 0 : i32
    return %c0_i32, %c0_i32_0 : i32, i32
  }
  func.func @transform_2(%arg0: i32) -> (i32, i32) {
    %c0_i32 = arith.constant 0 : i32
    %c0_i32_0 = arith.constant 0 : i32
    %c0_i32_1 = arith.constant 0 : i32
    return %c0_i32, %c0_i32_0 : i32, i32
  }
  func.func @transform_3(%arg0: i32) -> (i32, i32) {
    %c0_i32 = arith.constant 0 : i32
    %c0_i32_0 = arith.constant 0 : i32
    %c0_i32_1 = arith.constant 0 : i32
    return %c0_i32, %c0_i32_0 : i32, i32
  }
  func.func @transform_4(%arg0: i32) -> (i32, i32) {
    %c0_i32 = arith.constant 0 : i32
    %c0_i32_0 = arith.constant 0 : i32
    %c0_i32_1 = arith.constant 0 : i32
    return %c0_i32, %c0_i32_0 : i32, i32
  }
  func.func @transform_5(%arg0: i32) -> (i32, i32) {
    %c0_i32 = arith.constant 0 : i32
    %c0_i32_0 = arith.constant 0 : i32
    %c0_i32_1 = arith.constant 0 : i32
    return %c0_i32, %c0_i32_0 : i32, i32
  }
  func.func @transform_6(%arg0: i32) -> (i32, i32) {
    %c0_i32 = arith.constant 0 : i32
    %c0_i32_0 = arith.constant 0 : i32
    %c0_i32_1 = arith.constant 0 : i32
    return %c0_i32, %c0_i32_0 : i32, i32
  }
  func.func @transform_7(%arg0: i32) -> (i32, i32) {
    %c0_i32 = arith.constant 0 : i32
    %c0_i32_0 = arith.constant 0 : i32
    return %arg0, %c0_i32 : i32, i32
  }
}

</mosaic_0001>

<llo_original>
// kernel: tpu_custom_call.1
$region0: #{tpu_custom_call.1}
  #allocation0 [shape = 'u32[]', space=smem, size = 0x4, offset = 0x4, fixed_abs, tag = 'smem constant byte address 0x4 - core index']
  #allocation1 [shape = 'u32[144,128]{1,0:T(1,128)}', space=vmem, size = 0x12000, scoped, tag = 'internal scratch']
  %s0 = inlined_call_operand.vmem [shape: f32[16,32], index: 0, kind: input, shape index: {}]
  %s1 = inlined_call_operand.vmem [shape: f32[1,32], index: 1, kind: input, shape index: {}]
  %s2 = inlined_call_operand.vmem [shape: f32[1,32], index: 2, kind: input, shape index: {}]
  %s3 = inlined_call_operand.vmem [shape: bf16[32,256], index: 3, kind: input, shape index: {}]
  %s4 = inlined_call_operand.vmem [shape: f32[1,256], index: 4, kind: input, shape index: {}]
  %s5 = inlined_call_operand.vmem [shape: bf16[256,32], index: 5, kind: input, shape index: {}]
  %s6 = inlined_call_operand.vmem [shape: f32[1,32], index: 6, kind: input, shape index: {}]
  %s7 = inlined_call_operand.hbm [shape: f32[16,32], index: 7, kind: output, shape index: {}]
  %s8 = sld [smem:[#allocation0]]
  $region61: #{tpu_custom_call.1} parent=0
    _
  %s10 = ssub.s32 1, %s8
  %s11 = scalar_select 0, %s10, %s8
  $region1: #{tpu_custom_call.1} parent=0
    #allocation2 [shape = 'u8[8192]{0}', space=vmem, size = 0x2000, scoped, tag = 'output window, operand 0']
    #allocation3 [shape = 's32[2]{0}', space=sflag, size = 0x8, scoped, tag = 'scoped memory for tpu_custom_call.1']
    %12 = vsyncpa [#allocation3], 0
    %s13 = scalar_lea.sflag [#allocation3], 1
    %14 = vsyncpa %s13, 0
    loop: start=0, step=1, limit=4
    $region2: #{tpu_custom_call.1} parent=1 // loop_pre_header
      _
    $region3: #{tpu_custom_call.1} parent=1 // loop_header
      %s16 = sphi 0, %s20
      %p17 = scmp.ge.s32.totalorder %s16, 4
      %s26 = sphi 0, %s28
      %s29 = sphi 0, %s26
      %s30 = sphi 0, %s29
      %s46 = sphi 0, %s30
      %s50 = sphi 0, %s50
      %s52 = sphi 0, %s50
      %s53 = sphi 0, %s52
      %s67 = sphi 0, %s53
      %s71 = sphi 0, %s71
      %s73 = sphi 0, %s71
      %s74 = sphi 0, %s73
      %s88 = sphi 0, %s74
      %s92 = sphi 0, %s92
      %s94 = sphi 0, %s92
      %s95 = sphi 0, %s94
      %s109 = sphi 0, %s95
      %s113 = sphi 0, %s113
      %s115 = sphi 0, %s113
      %s116 = sphi 0, %s115
      %s130 = sphi 0, %s116
      %s134 = sphi 0, %s134
      %s136 = sphi 0, %s134
      %s137 = sphi 0, %s136
      %s151 = sphi 0, %s137
      %s155 = sphi 0, %s155
      %s157 = sphi 0, %s155
      %s158 = sphi 0, %s157
      %s172 = sphi 0, %s158
      %s178 = sphi 0, %s180
      %s181 = sphi 0, %s178
      %s182 = sphi 0, %s181
      %s198 = sphi 0, %s182
    $region4: #{tpu_custom_call.1} parent=1 // loop_header_branch
      %19 = sbr.rel (%p17) target = $region8
    $region5: #{tpu_custom_call.1} parent=1 // loop_body
      %s21 = ssub.s32 %s16, 1
      %s22 = ssub.s32 %s16, 2
      %s23 = sadd.s32 %s16, 1
      %s24 = ssub.s32 %s16, %s23
      %p25 = scmp.eq.s32.totalorder %s24, 0
      %s27 = sadd.s32 %s26, 1
      %s28 = scalar_select %p25, %s26, %s27
      %p31 = pneg %p25
      %p32 = scmp.eq.s32.totalorder %s16, 1
      %p33 = por %p31, %p32
      %p34 = scmp.ne.s32.totalorder %s26, %s29
      %p35 = scmp.eq.s32.totalorder %s16, 0
      %p36 = por %p34, %p35
      %p37 = scmp.ne.s32.totalorder %s26, %s29
      %p38 = scmp.eq.s32.totalorder %s21, 1
      %p39 = por %p37, %p38
      %p40 = scmp.ne.s32.totalorder %s29, %s30
      %p41 = scmp.eq.s32.totalorder %s21, 0
      %p42 = por %p40, %p41
      %p43 = scmp.ne.s32.totalorder %s29, %s30
      %p44 = scmp.eq.s32.totalorder %s22, 1
      %p45 = por %p43, %p44
      %p47 = scmp.ne.s32.totalorder %s30, %s46
      %p48 = scmp.eq.s32.totalorder %s22, 0
      %p49 = por %p47, %p48
      %s51 = sadd.s32 %s50, 1
      %p54 = scmp.eq.s32.totalorder %s16, 1
      %p55 = scmp.ne.s32.totalorder %s50, %s52
      %p56 = scmp.eq.s32.totalorder %s16, 0
      %p57 = por %p55, %p56
      %p58 = scmp.ne.s32.totalorder %s50, %s52
      %p59 = scmp.eq.s32.totalorder %s21, 1
      %p60 = por %p58, %p59
      %p61 = scmp.ne.s32.totalorder %s52, %s53
      %p62 = scmp.eq.s32.totalorder %s21, 0
      %p63 = por %p61, %p62
      %p64 = scmp.ne.s32.totalorder %s52, %s53
      %p65 = scmp.eq.s32.totalorder %s22, 1
      %p66 = por %p64, %p65
      %p68 = scmp.ne.s32.totalorder %s53, %s67
      %p69 = scmp.eq.s32.totalorder %s22, 0
      %p70 = por %p68, %p69
      %s72 = sadd.s32 %s71, 1
      %p75 = scmp.eq.s32.totalorder %s16, 1
      %p76 = scmp.ne.s32.totalorder %s71, %s73
      %p77 = scmp.eq.s32.totalorder %s16, 0
      %p78 = por %p76, %p77
      %p79 = scmp.ne.s32.totalorder %s71, %s73
      %p80 = scmp.eq.s32.totalorder %s21, 1
      %p81 = por %p79, %p80
      %p82 = scmp.ne.s32.totalorder %s73, %s74
      %p83 = scmp.eq.s32.totalorder %s21, 0
      %p84 = por %p82, %p83
      %p85 = scmp.ne.s32.totalorder %s73, %s74
      %p86 = scmp.eq.s32.totalorder %s22, 1
      %p87 = por %p85, %p86
      %p89 = scmp.ne.s32.totalorder %s74, %s88
      %p90 = scmp.eq.s32.totalorder %s22, 0
      %p91 = por %p89, %p90
      %s93 = sadd.s32 %s92, 1
      %p96 = scmp.eq.s32.totalorder %s16, 1
      %p97 = scmp.ne.s32.totalorder %s92, %s94
      %p98 = scmp.eq.s32.totalorder %s16, 0
      %p99 = por %p97, %p98
      %p100 = scmp.ne.s32.totalorder %s92, %s94
      %p101 = scmp.eq.s32.totalorder %s21, 1
      %p102 = por %p100, %p101
      %p103 = scmp.ne.s32.totalorder %s94, %s95
      %p104 = scmp.eq.s32.totalorder %s21, 0
      %p105 = por %p103, %p104
      %p106 = scmp.ne.s32.totalorder %s94, %s95
      %p107 = scmp.eq.s32.totalorder %s22, 1
      %p108 = por %p106, %p107
      %p110 = scmp.ne.s32.totalorder %s95, %s109
      %p111 = scmp.eq.s32.totalorder %s22, 0
      %p112 = por %p110, %p111
      %s114 = sadd.s32 %s113, 1
      %p117 = scmp.eq.s32.totalorder %s16, 1
      %p118 = scmp.ne.s32.totalorder %s113, %s115
      %p119 = scmp.eq.s32.totalorder %s16, 0
      %p120 = por %p118, %p119
      %p121 = scmp.ne.s32.totalorder %s113, %s115
      %p122 = scmp.eq.s32.totalorder %s21, 1
      %p123 = por %p121, %p122
      %p124 = scmp.ne.s32.totalorder %s115, %s116
      %p125 = scmp.eq.s32.totalorder %s21, 0
      %p126 = por %p124, %p125
      %p127 = scmp.ne.s32.totalorder %s115, %s116
      %p128 = scmp.eq.s32.totalorder %s22, 1
      %p129 = por %p127, %p128
      %p131 = scmp.ne.s32.totalorder %s116, %s130
      %p132 = scmp.eq.s32.totalorder %s22, 0
      %p133 = por %p131, %p132
      %s135 = sadd.s32 %s134, 1
      %p138 = scmp.eq.s32.totalorder %s16, 1
      %p139 = scmp.ne.s32.totalorder %s134, %s136
      %p140 = scmp.eq.s32.totalorder %s16, 0
      %p141 = por %p139, %p140
      %p142 = scmp.ne.s32.totalorder %s134, %s136
      %p143 = scmp.eq.s32.totalorder %s21, 1
      %p144 = por %p142, %p143
      %p145 = scmp.ne.s32.totalorder %s136, %s137
      %p146 = scmp.eq.s32.totalorder %s21, 0
      %p147 = por %p145, %p146
      %p148 = scmp.ne.s32.totalorder %s136, %s137
      %p149 = scmp.eq.s32.totalorder %s22, 1
      %p150 = por %p148, %p149
      %p152 = scmp.ne.s32.totalorder %s137, %s151
      %p153 = scmp.eq.s32.totalorder %s22, 0
      %p154 = por %p152, %p153
      %s156 = sadd.s32 %s155, 1
      %p159 = scmp.eq.s32.totalorder %s16, 1
      %p160 = scmp.ne.s32.totalorder %s155, %s157
      %p161 = scmp.eq.s32.totalorder %s16, 0
      %p162 = por %p160, %p161
      %p163 = scmp.ne.s32.totalorder %s155, %s157
      %p164 = scmp.eq.s32.totalorder %s21, 1
      %p165 = por %p163, %p164
      %p166 = scmp.ne.s32.totalorder %s157, %s158
      %p167 = scmp.eq.s32.totalorder %s21, 0
      %p168 = por %p166, %p167
      %p169 = scmp.ne.s32.totalorder %s157, %s158
      %p170 = scmp.eq.s32.totalorder %s22, 1
      %p171 = por %p169, %p170
      %p173 = scmp.ne.s32.totalorder %s158, %s172
      %p174 = scmp.eq.s32.totalorder %s22, 0
      %p175 = por %p173, %p174
      %s176 = ssub.s32 %s16, %s23
      %p177 = scmp.eq.s32.totalorder %s176, 0
      %s179 = sadd.s32 %s178, 1
      %s180 = scalar_select %p177, %s178, %s179
      %p183 = pneg %p177
      %p184 = scmp.eq.s32.totalorder %s16, 1
      %p185 = por %p183, %p184
      %p186 = scmp.ne.s32.totalorder %s178, %s181
      %p187 = scmp.eq.s32.totalorder %s16, 0
      %p188 = por %p186, %p187
      %p189 = scmp.ne.s32.totalorder %s178, %s181
      %p190 = scmp.eq.s32.totalorder %s21, 1
      %p191 = por %p189, %p190
      %p192 = scmp.ne.s32.totalorder %s181, %s182
      %p193 = scmp.eq.s32.totalorder %s21, 0
      %p194 = por %p192, %p193
      %p195 = scmp.ne.s32.totalorder %s181, %s182
      %p196 = scmp.eq.s32.totalorder %s22, 1
      %p197 = por %p195, %p196
      %p199 = scmp.ne.s32.totalorder %s182, %s198
      %p200 = scmp.eq.s32.totalorder %s22, 0
      %p201 = por %p199, %p200
      %p202 = scmp.le.s32.totalorder 1, %s16
      %p203 = scmp.lt.s32.totalorder %s16, 3
      %p204 = pnand %p202, %p203
      %p205 = pneg %p204
      // Predicated region
      $region9: #{tpu_custom_call.1} parent=5 // pred_check
        _
      $region10: #{tpu_custom_call.1} parent=5 // pred_check_branch
        %207 = sbr.rel (%p204) target = $region12
      $region11: #{tpu_custom_call.1} parent=5 // pred_region
        %s208 = ssub.s32 %s16, 1
        // Predicated region
        $region13: #{tpu_custom_call.1} parent=11 // pred_check
          %p209 = pneg %p63
        $region14: #{tpu_custom_call.1} parent=11 // pred_check_branch
          %211 = sbr.rel (%p209) target = $region16
        $region15: #{tpu_custom_call.1} parent=11 // pred_region
          _
        $region16: #{tpu_custom_call.1} parent=11 // pred_fallthru
          _
        // Predicated region
        $region17: #{tpu_custom_call.1} parent=11 // pred_check
          %p212 = pneg %p84
        $region18: #{tpu_custom_call.1} parent=11 // pred_check_branch
          %214 = sbr.rel (%p212) target = $region20
        $region19: #{tpu_custom_call.1} parent=11 // pred_region
          _
        $region20: #{tpu_custom_call.1} parent=11 // pred_fallthru
          _
        // Predicated region
        $region21: #{tpu_custom_call.1} parent=11 // pred_check
          %p215 = pneg %p105
        $region22: #{tpu_custom_call.1} parent=11 // pred_check_branch
          %217 = sbr.rel (%p215) target = $region24
        $region23: #{tpu_custom_call.1} parent=11 // pred_region
          _
        $region24: #{tpu_custom_call.1} parent=11 // pred_fallthru
          _
        // Predicated region
        $region25: #{tpu_custom_call.1} parent=11 // pred_check
          %p218 = pneg %p126
        $region26: #{tpu_custom_call.1} parent=11 // pred_check_branch
          %220 = sbr.rel (%p218) target = $region28
        $region27: #{tpu_custom_call.1} parent=11 // pred_region
          _
        $region28: #{tpu_custom_call.1} parent=11 // pred_fallthru
          _
        // Predicated region
        $region29: #{tpu_custom_call.1} parent=11 // pred_check
          %p221 = pneg %p147
        $region30: #{tpu_custom_call.1} parent=11 // pred_check_branch
          %223 = sbr.rel (%p221) target = $region32
        $region31: #{tpu_custom_call.1} parent=11 // pred_region
          _
        $region32: #{tpu_custom_call.1} parent=11 // pred_fallthru
          _
        // Predicated region
        $region33: #{tpu_custom_call.1} parent=11 // pred_check
          %p224 = pneg %p168
        $region34: #{tpu_custom_call.1} parent=11 // pred_check_branch
          %226 = sbr.rel (%p224) target = $region36
        $region35: #{tpu_custom_call.1} parent=11 // pred_region
          _
        $region36: #{tpu_custom_call.1} parent=11 // pred_fallthru
          _
      $region12: #{tpu_custom_call.1} parent=5 // pred_fallthru
        _
      %p227 = scmp.lt.s32.totalorder %s16, 2
      // Predicated region
      $region37: #{tpu_custom_call.1} parent=5 // pred_check
        %p228 = pneg %p227
      $region38: #{tpu_custom_call.1} parent=5 // pred_check_branch
        %230 = sbr.rel (%p228) target = $region40
      $region39: #{tpu_custom_call.1} parent=5 // pred_region
        // Predicated region
        $region41: #{tpu_custom_call.1} parent=39 // pred_check
          %p231 = pneg %p36
        $region42: #{tpu_custom_call.1} parent=39 // pred_check_branch
          %233 = sbr.rel (%p231) target = $region44
        $region43: #{tpu_custom_call.1} parent=39 // pred_region
          %p234 = scmp.lt.s32.totalorder %s16, 1
          %s235 = scalar_select %p234, %s16, 1
          %s236 = smul.addr %s235, 8
          %s237 = scalar_lea.vmem %s0, %s236
        $region44: #{tpu_custom_call.1} parent=39 // pred_fallthru
          _
      $region40: #{tpu_custom_call.1} parent=5 // pred_fallthru
        _
      %p238 = scmp.le.s32.totalorder 1, %s16
      %p239 = scmp.lt.s32.totalorder %s16, 3
      %p240 = pnand %p238, %p239
      %p241 = pneg %p240
      // Predicated region
      $region45: #{tpu_custom_call.1} parent=5 // pred_check
        _
      $region46: #{tpu_custom_call.1} parent=5 // pred_check_branch
        %243 = sbr.rel (%p240) target = $region48
      $region47: #{tpu_custom_call.1} parent=5 // pred_region
        %s244 = ssub.s32 %s16, 1
        %p245 = scmp.lt.s32.totalorder %s21, 1
        %s246 = scalar_select %p245, %s21, 1
        %s247 = smul.addr %s246, 8
        %s248 = scalar_lea.vmem %s0, %s247
        %p249 = pneg %p42
        %p250 = pneg %p39
        %p251 = pneg %p63
        %p252 = pneg %p60
        %p253 = pneg %p84
        %p254 = pneg %p81
        %p255 = pneg %p105
        %p256 = pneg %p102
        %p257 = pneg %p126
        %p258 = pneg %p123
        %p259 = pneg %p147
        %p260 = pneg %p144
        %p261 = pneg %p168
        %p262 = pneg %p165
        %p263 = pneg %p194
        %p264 = pneg %p191
        %s265 = sand.u32 %s181, 1
        %s266 = scalar_lea.sflag [#allocation3], %s265
        %s267 = sand.u32 %s181, 1
        %s268 = smul.addr %s267, 8
        %s269 = scalar_lea.vmem [#allocation2], %s268
        %p270 = scmp.lt.s32.totalorder %s21, 1
        %s271 = scalar_select %p270, %s21, 1
        %s272 = smul.addr %s271, 8
        %s273 = scalar_lea.vmem %s0, %s272
        %v275 = vld [vmem:[%s273] sm:$0xff]
        %v276 = vld [vmem:[%s1] sm:$0x1]
        %v277 = vld [vmem:[%s2] sm:$0x1]
        %vm278 = vcmask 261120
        %v279 = vsel %vm278, %v275, 0.0
        %280 = vadd.xlane.f32.xlu0 %v279
        %v281 = vpop.xlane.xlu0 %280
        %v282 = vrcp.pop 32.0
        %v283 = vmul.f32 %v281, %v282
        %v284 = vsub.f32 %v275, %v283
        %v285 = vmul.f32 %v284, %v284
        %v286 = vsel %vm278, %v285, 0.0
        %287 = vadd.xlane.f32.xlu0 %v286
        %v288 = vpop.xlane.xlu0 %287
        %v289 = vmul.f32 %v288, %v282
        %v290 = vadd.f32 %v289, 1e-05
        %v291 = vrsqrt.pop %v290
        %v292 = vmul.f32 %v284, %v291
        %v294 = vlaneseq
        %v295 = vshrl.u32 %v294, 7
        %v296 = vsub.s32 0, %v295
        %v297 = vrot.slane %v276, %v296
        %v299 = vmul.f32 %v292, %v297
        %v301 = vlaneseq
        %v302 = vshrl.u32 %v301, 7
        %v303 = vsub.s32 0, %v302
        %v304 = vrot.slane %v277, %v303
        %v306 = vadd.f32 %v299, %v304
        %v307 = vpack.c.bf16 %v306, %v306
        %v308 = vld [vmem:[%s3] sm:$0xff]
        %v309 = vld [vmem:[%s3 + $0x8] sm:$0xff]
        %v310 = vld [vmem:[%s3 + $0x10] sm:$0xff]
        %v311 = vld [vmem:[%s3 + $0x18] sm:$0xff]
        %v312 = vld [vmem:[%s4] sm:$0x3]
        %v314 = vlaneseq
        %v315 = vshrl.u32 %v314, 7
        %v316 = vsub.s32 0, %v315
        %v317 = vrot.slane %v312, %v316
        %v318 = vlaneseq
        %v319 = vshrl.u32 %v318, 7
        %v320 = vsub.s32 1, %v319
        %v321 = vrot.slane %v312, %v320
        %v328 = vunpack.c.l.b16 %v308
        %v329 = vunpack.c.h.b16 %v308
        %v330 = vunpack.c.l.b16 %v309
        %v331 = vunpack.c.h.b16 %v309
        %v332 = vunpack.c.l.b16 %v310
        %v333 = vunpack.c.h.b16 %v310
        %v334 = vunpack.c.l.b16 %v311
        %v335 = vunpack.c.h.b16 %v311
        %v336 = vpack.c.b16 %v330, %v328
        %v337 = vpack.c.b16 %v331, %v329
        %v338 = vpack.c.b16 %v334, %v332
        %v339 = vpack.c.b16 %v335, %v333
        %v345 = vsel %vm278, %v307, 0
        %347 = vmatprep.subr.bf16.mxu0 %v337
        %348 = vmatpush1.bf16.msra.mxu0 %v336
        %349 = vmatprep.subr.bf16.mxu0 %v339
        %350 = vmatpush1.bf16.msra.mxu0 %v338
        %351 = vmatprep.subr.bf16.mxu0 0
        %352 = vmatpush1.bf16.msra.mxu0 0
        %353 = vmatprep.subr.bf16.mxu0 0
        %354 = vmatpush1.bf16.msra.mxu0 0
        %355 = vmatprep.subr.bf16.mxu0 0
        %356 = vmatpush1.bf16.msra.mxu0 0
        %357 = vmatprep.subr.bf16.mxu0 0
        %358 = vmatpush1.bf16.msra.mxu0 0
        %359 = vmatprep.subr.bf16.mxu0 0
        %360 = vmatpush1.bf16.msra.mxu0 0
        %361 = vmatprep.subr.bf16.mxu0 0
        %362 = vmatpush1.bf16.msra.mxu0 0
        %363 = vmatprep.subr.bf16.mxu0 0
        %364 = vmatpush1.bf16.msra.mxu0 0
        %365 = vmatprep.subr.bf16.mxu0 0
        %366 = vmatpush1.bf16.msra.mxu0 0
        %367 = vmatprep.subr.bf16.mxu0 0
        %368 = vmatpush1.bf16.msra.mxu0 0
        %369 = vmatprep.subr.bf16.mxu0 0
        %370 = vmatpush1.bf16.msra.mxu0 0
        %371 = vmatprep.subr.bf16.mxu0 0
        %372 = vmatpush1.bf16.msra.mxu0 0
        %373 = vmatprep.subr.bf16.mxu0 0
        %374 = vmatpush1.bf16.msra.mxu0 0
        %375 = vmatprep.subr.bf16.mxu0 0
        %376 = vmatpush1.bf16.msra.mxu0 0
        %377 = vmatprep.subr.bf16.mxu0 0
        %378 = vmatpush1.bf16.msra.mxu0 0
        %379 = vmatprep.mubr.bf16.mxu0 0
        %380 = vmatmul.mubr.bf16.gmra.mrb[0].mxu0 %v345
        %v381 = vpop.f32.mrb[0].mxu0
        %v382 = vadd.f32 %v317, %v381
        %v383 = vpop.f32.mrb[0].mxu0
        %v384 = vadd.f32 %v321, %v383
        %v385 = vpop.f32.mrb[0].mxu0
        %v386 = vpop.f32.mrb[0].mxu0
        %387 = vdwg.mxu0
        %v388 = vmax.f32 %v382, 0.0
        %v389 = vmax.f32 %v384, 0.0
        %v390 = vpack.c.bf16 %v388, %v388
        %v391 = vpack.c.bf16 %v389, %v389
        %v392 = vld [vmem:[%s5] sm:$0xf]
        %v393 = vld [vmem:[%s5 + $0x4] sm:$0xf]
        %v394 = vld [vmem:[%s5 + $0x8] sm:$0xf]
        %v395 = vld [vmem:[%s5 + $0xc] sm:$0xf]
        %v396 = vld [vmem:[%s5 + $0x10] sm:$0xf]
        %v397 = vld [vmem:[%s5 + $0x14] sm:$0xf]
        %v398 = vld [vmem:[%s5 + $0x18] sm:$0xf]
        %v399 = vld [vmem:[%s5 + $0x1c] sm:$0xf]
        %v400 = vld [vmem:[%s5 + $0x20] sm:$0xf]
        %v401 = vld [vmem:[%s5 + $0x24] sm:$0xf]
        %v402 = vld [vmem:[%s5 + $0x28] sm:$0xf]
        %v403 = vld [vmem:[%s5 + $0x2c] sm:$0xf]
        %v404 = vld [vmem:[%s5 + $0x30] sm:$0xf]
        %v405 = vld [vmem:[%s5 + $0x34] sm:$0xf]
        %v406 = vld [vmem:[%s5 + $0x38] sm:$0xf]
        %v407 = vld [vmem:[%s5 + $0x3c] sm:$0xf]
        %v408 = vld [vmem:[%s5 + $0x40] sm:$0xf]
        %v409 = vld [vmem:[%s5 + $0x44] sm:$0xf]
        %v410 = vld [vmem:[%s5 + $0x48] sm:$0xf]
        %v411 = vld [vmem:[%s5 + $0x4c] sm:$0xf]
        %v412 = vld [vmem:[%s5 + $0x50] sm:$0xf]
        %v413 = vld [vmem:[%s5 + $0x54] sm:$0xf]
        %v414 = vld [vmem:[%s5 + $0x58] sm:$0xf]
        %v415 = vld [vmem:[%s5 + $0x5c] sm:$0xf]
        %v416 = vld [vmem:[%s5 + $0x60] sm:$0xf]
        %v417 = vld [vmem:[%s5 + $0x64] sm:$0xf]
        %v418 = vld [vmem:[%s5 + $0x68] sm:$0xf]
        %v419 = vld [vmem:[%s5 + $0x6c] sm:$0xf]
        %v420 = vld [vmem:[%s5 + $0x70] sm:$0xf]
        %v421 = vld [vmem:[%s5 + $0x74] sm:$0xf]
        %v422 = vld [vmem:[%s5 + $0x78] sm:$0xf]
        %v423 = vld [vmem:[%s5 + $0x7c] sm:$0xf]
        %v424 = vld [vmem:[%s6] sm:$0x1]
        %v426 = vlaneseq
        %v427 = vshrl.u32 %v426, 7
        %v428 = vsub.s32 0, %v427
        %v429 = vrot.slane %v424, %v428
        %v463 = vunpack.c.l.b16 %v392
        %v464 = vunpack.c.l.b16 %v393
        %v465 = vunpack.c.l.b16 %v394
        %v466 = vunpack.c.l.b16 %v395
        %v467 = vunpack.c.l.b16 %v396
        %v468 = vunpack.c.l.b16 %v397
        %v469 = vunpack.c.l.b16 %v398
        %v470 = vunpack.c.l.b16 %v399
        %v471 = vunpack.c.l.b16 %v400
        %v472 = vunpack.c.l.b16 %v401
        %v473 = vunpack.c.l.b16 %v402
        %v474 = vunpack.c.l.b16 %v403
        %v475 = vunpack.c.l.b16 %v404
        %v476 = vunpack.c.l.b16 %v405
        %v477 = vunpack.c.l.b16 %v406
        %v478 = vunpack.c.l.b16 %v407
        %v479 = vunpack.c.l.b16 %v408
        %v480 = vunpack.c.l.b16 %v409
        %v481 = vunpack.c.l.b16 %v410
        %v482 = vunpack.c.l.b16 %v411
        %v483 = vunpack.c.l.b16 %v412
        %v484 = vunpack.c.l.b16 %v413
        %v485 = vunpack.c.l.b16 %v414
        %v486 = vunpack.c.l.b16 %v415
        %v487 = vunpack.c.l.b16 %v416
        %v488 = vunpack.c.l.b16 %v417
        %v489 = vunpack.c.l.b16 %v418
        %v490 = vunpack.c.l.b16 %v419
        %v491 = vunpack.c.l.b16 %v420
        %v492 = vunpack.c.l.b16 %v421
        %v493 = vunpack.c.l.b16 %v422
        %v494 = vunpack.c.l.b16 %v423
        %v495 = vpack.c.b16 %v464, %v463
        %v496 = vpack.c.b16 %v466, %v465
        %v497 = vpack.c.b16 %v468, %v467
        %v498 = vpack.c.b16 %v470, %v469
        %v499 = vpack.c.b16 %v472, %v471
        %v500 = vpack.c.b16 %v474, %v473
        %v501 = vpack.c.b16 %v476, %v475
        %v502 = vpack.c.b16 %v478, %v477
        %v503 = vpack.c.b16 %v480, %v479
        %v504 = vpack.c.b16 %v482, %v481
        %v505 = vpack.c.b16 %v484, %v483
        %v506 = vpack.c.b16 %v486, %v485
        %v507 = vpack.c.b16 %v488, %v487
        %v508 = vpack.c.b16 %v490, %v489
        %v509 = vpack.c.b16 %v492, %v491
        %v510 = vpack.c.b16 %v494, %v493
        %527 = vmatprep.subr.bf16.mxu0 0
        %528 = vmatpush1.bf16.msra.mxu0 %v495
        %529 = vmatprep.subr.bf16.mxu0 0
        %530 = vmatpush1.bf16.msra.mxu0 %v496
        %531 = vmatprep.subr.bf16.mxu0 0
        %532 = vmatpush1.bf16.msra.mxu0 %v497
        %533 = vmatprep.subr.bf16.mxu0 0
        %534 = vmatpush1.bf16.msra.mxu0 %v498
        %535 = vmatprep.subr.bf16.mxu0 0
        %536 = vmatpush1.bf16.msra.mxu0 %v499
        %537 = vmatprep.subr.bf16.mxu0 0
        %538 = vmatpush1.bf16.msra.mxu0 %v500
        %539 = vmatprep.subr.bf16.mxu0 0
        %540 = vmatpush1.bf16.msra.mxu0 %v501
        %541 = vmatprep.subr.bf16.mxu0 0
        %542 = vmatpush1.bf16.msra.mxu0 %v502
        %543 = vmatprep.subr.bf16.mxu0 0
        %544 = vmatpush1.bf16.msra.mxu0 %v503
        %545 = vmatprep.subr.bf16.mxu0 0
        %546 = vmatpush1.bf16.msra.mxu0 %v504
        %547 = vmatprep.subr.bf16.mxu0 0
        %548 = vmatpush1.bf16.msra.mxu0 %v505
        %549 = vmatprep.subr.bf16.mxu0 0
        %550 = vmatpush1.bf16.msra.mxu0 %v506
        %551 = vmatprep.subr.bf16.mxu0 0
        %552 = vmatpush1.bf16.msra.mxu0 %v507
        %553 = vmatprep.subr.bf16.mxu0 0
        %554 = vmatpush1.bf16.msra.mxu0 %v508
        %555 = vmatprep.subr.bf16.mxu0 0
        %556 = vmatpush1.bf16.msra.mxu0 %v509
        %557 = vmatprep.subr.bf16.mxu0 0
        %558 = vmatpush1.bf16.msra.mxu0 %v510
        %559 = vmatprep.mubr.bf16.mxu0 %v391
        %560 = vmatmul.mubr.bf16.gmra.mrb[0].mxu0 %v390
        %v561 = vpop.f32.mrb[0].mxu0
        %v562 = vadd.f32 %v429, %v561
        %v563 = vpop.f32.mrb[0].mxu0
        %v564 = vpop.f32.mrb[0].mxu0
        %v565 = vpop.f32.mrb[0].mxu0
        %566 = vdwg.mxu0
        %567 = vst.msk [vmem:[%s269] sm:$0xff] %vm278, %v562
        %s568 = sand.u32 %s181, 1
        %s569 = scalar_lea.sflag [#allocation3], %s568
        %s570 = sand.u32 %s181, 1
        %s571 = smul.addr %s570, 8
        %s572 = scalar_lea.vmem [#allocation2], %s571
        // Predicated region
        $region49: #{tpu_custom_call.1} parent=47 // pred_check
          %p573 = pneg %p191
        $region50: #{tpu_custom_call.1} parent=47 // pred_check_branch
          %575 = sbr.rel (%p573) target = $region52
        $region51: #{tpu_custom_call.1} parent=47 // pred_region
          %s577 = ssub.s32 128, 128
          %578 = vsyncadd %s569, %s577
          %s579 = smul.addr %s21, 128
          %s580 = scalar_lea.hbm %s7, %s579
          %s582 = sshll.u32 %s572, 4
          %s583 = int_to_ptr.vmem [resolvable:$true] %s582
          %585 = dma.vmem_to_hbm [thread:$0]  %s583, 128, %s580, %s569
        $region52: #{tpu_custom_call.1} parent=47 // pred_fallthru
          _
      $region48: #{tpu_custom_call.1} parent=5 // pred_fallthru
        _
      %p586 = scmp.le.s32.totalorder 2, %s16
      // Predicated region
      $region53: #{tpu_custom_call.1} parent=5 // pred_check
        %p587 = pneg %p586
      $region54: #{tpu_custom_call.1} parent=5 // pred_check_branch
        %589 = sbr.rel (%p587) target = $region56
      $region55: #{tpu_custom_call.1} parent=5 // pred_region
        %s590 = ssub.s32 %s16, 2
        // Predicated region
        $region57: #{tpu_custom_call.1} parent=55 // pred_check
          %p591 = pneg %p197
        $region58: #{tpu_custom_call.1} parent=55 // pred_check_branch
          %593 = sbr.rel (%p591) target = $region60
        $region59: #{tpu_custom_call.1} parent=55 // pred_region
          %s594 = sand.u32 %s182, 1
          %s595 = scalar_lea.sflag [#allocation3], %s594
          %s596 = sand.u32 %s182, 1
          %s597 = smul.addr %s596, 8
          %s598 = scalar_lea.vmem [#allocation2], %s597
          %599 = dma.done %s595, 128
        $region60: #{tpu_custom_call.1} parent=55 // pred_fallthru
          _
      $region56: #{tpu_custom_call.1} parent=5 // pred_fallthru
        _
    $region6: #{tpu_custom_call.1} parent=1 // loop_footer
      %s20 = sadd.s32 1, %s16
    $region7: #{tpu_custom_call.1} parent=1 // loop_footer_branch
      %15 = sbr.rel target = $region3
    $region8: #{tpu_custom_call.1} parent=1 // loop_exit
      _
    %600 = vsyncpa [#allocation3], 1
    %s601 = scalar_lea.sflag [#allocation3], 1
    %602 = vsyncpa %s601, 1

</llo_original>
